<compile_context>
chip_gen: v7x
topology: tpu7x:2x2x1
jax: 0.10.0
libtpu: 0.0.40
codegen_flags: <defaults>
</compile_context>

<pallas_src>
import jax
import jax.numpy as jnp
from jax.experimental import pallas as pl
from jax.experimental.pallas import tpu as pltpu


def _copy_kernel(x_ref, o_ref):
    # Whole-tile VMEM pass-through.  With input_output_aliases the output HBM
    # buffer *is* the input buffer, so in the donated path this is effectively
    # a no-op writeback of identical data.
    o_ref[...] = x_ref[...]


# Per-buffer tile budget: 2 MiB → with double-buffering of input + output the
# pipeline holds ~8 MiB of VMEM, which fits v5e's 16 MiB scoped default and is
# far inside v7x's 32 MiB scoped / 64 MiB physical VMEM.
_TARGET_BLOCK_BYTES = 2 * 1024 * 1024


def _lane_dense_view(total):
    """Pick a lane-dense (rows, cols) factorization (cols = multiple of 128)."""
    for cols in (1024, 512, 256, 128):
        if total % cols == 0:
            return total // cols, cols
    return None


def base_model_forward(x: jax.Array) -> jax.Array:
    """Pallas equivalent of BaseModel.forward (identity — see TODO above).

    The pallas_call aliases output onto the input buffer; when the caller
    donates `x` (see `base_model_forward_donated`) no extra HBM traffic is
    materialized for the identity.
    """
    orig_shape = x.shape
    total = x.size
    itemsize = x.dtype.itemsize

    layout = _lane_dense_view(total)
    if layout is None:
        # TODO(synk): element count not a multiple of 128 — fall back to a
        # single full-array block (still aliased, still correct).
        x2d = x.reshape(-1, orig_shape[-1])
        rows, cols = x2d.shape
        block_rows = rows
    else:
        rows, cols = layout
        x2d = x.reshape(rows, cols)
        max_rows = max(8, _TARGET_BLOCK_BYTES // (cols * itemsize))
        # Either the full row extent (small inputs) or an (8,·)-aligned tile.
        block_rows = rows if rows <= max_rows else (max_rows // 8) * 8

    grid = (pl.cdiv(rows, block_rows),)

    out2d = pl.pallas_call(
        _copy_kernel,
        out_shape=jax.ShapeDtypeStruct((rows, cols), x.dtype),
        grid_spec=pltpu.PrefetchScalarGridSpec(
            num_scalar_prefetch=0,
            grid=grid,
            in_specs=[pl.BlockSpec((block_rows, cols), lambda i: (i, 0))],
            out_specs=pl.BlockSpec((block_rows, cols), lambda i: (i, 0)),
        ),
        # Output aliases the input buffer — the identity does not allocate or
        # fill a second HBM array when the input is donated.
        input_output_aliases={0: 0},
        compiler_params=pltpu.CompilerParams(
            # Row tiles are independent: "parallel" lets v7x shard the grid
            # across its 2 TensorCores; neutral on single-core v5e/v6e.
            dimension_semantics=("parallel",),
        ),
    )(x2d)

    return out2d.reshape(orig_shape)


# Donating the argument lets XLA honour the in-place alias end-to-end (zero
# extra HBM copy).  Callers that still need `x` afterwards can call the
# un-donated `base_model_forward` directly (XLA inserts a defensive copy).
base_model_forward_donated = jax.jit(base_model_forward, donate_argnums=(0,))


if __name__ == "__main__":
    key = jax.random.PRNGKey(0)
    # Small NCHW input consistent with a generic vision-style module.
    x = jax.random.normal(key, (2, 4, 16, 16), dtype=jnp.float32)

    # Keep a host-side reference copy: `x` itself is donated to the kernel.
    x_host = jax.device_get(x)

    y = base_model_forward_donated(x)
    jax.block_until_ready(y)

    # Identity check (the only semantics BaseModel pins down).
    assert y.shape == x_host.shape and y.dtype == x_host.dtype
    assert bool(jnp.allclose(y, x_host))

    print("KERNEL_OK")
</pallas_src>

<mosaic_0001>
module attributes {stable_mosaic.version = 11 : i64} {
  func.func @_copy_kernel(%arg0: i32, %arg1: memref<2x1024xf32, #tpu.memory_space<vmem>>, %arg2: memref<2x1024xf32, #tpu.memory_space<vmem>>) attributes {dimension_semantics = [#tpu.dimension_semantics<parallel>], iteration_bounds = array<i64: 1>, scalar_prefetch = 0 : i64, scratch_operands = 0 : i64, tpu.core_type = #tpu.core_type<tc>, window_params = [{transform_indices = @transform_0, window_bounds = array<i64: 2, 1024>}, {transform_indices = @transform_1, window_bounds = array<i64: 2, 1024>}]} {
    %c0 = arith.constant 0 : index
    %c0_0 = arith.constant 0 : index
    %0 = vector.load %arg1[%c0, %c0_0] : memref<2x1024xf32, #tpu.memory_space<vmem>>, vector<2x1024xf32>
    %c0_1 = arith.constant 0 : index
    %c0_2 = arith.constant 0 : index
    %1 = vector.load %arg2[%c0_1, %c0_2] : memref<2x1024xf32, #tpu.memory_space<vmem>>, vector<2x1024xf32>
    tpu.vector_store %arg2[%c0_1, %c0_2], %0 {strides = array<i32>} : memref<2x1024xf32, #tpu.memory_space<vmem>>, vector<2x1024xf32>,
    return
  }
  func.func @transform_0(%arg0: i32) -> (i32, i32) {
    %c0_i32 = arith.constant 0 : i32
    %c0_i32_0 = arith.constant 0 : i32
    return %arg0, %c0_i32 : i32, i32
  }
  func.func @transform_1(%arg0: i32) -> (i32, i32) {
    %c0_i32 = arith.constant 0 : i32
    %c0_i32_0 = arith.constant 0 : i32
    return %arg0, %c0_i32 : i32, i32
  }
}

</mosaic_0001>

<llo_original>
// kernel: base_model_forward.1
$region0: #{base_model_forward.1}
  #allocation0 [shape = 'u32[]', space=smem, size = 0x4, offset = 0x4, fixed_abs, tag = 'smem constant byte address 0x4 - core index']
  #allocation1 [shape = 'u32[144,128]{1,0:T(1,128)}', space=vmem, size = 0x12000, scoped, tag = 'internal scratch']
  %s0 = inlined_call_operand.vmem [shape: f32[2,1024], index: 0, kind: input, shape index: {}, may-alias: {0,1}]
  %s1 = inlined_call_operand.vmem [shape: f32[2,1024], index: 1, kind: output, shape index: {}, may-alias: {0,1}]
  %s2 = sld [smem:[#allocation0]]
  $region14: #{base_model_forward.1} parent=0
    _
  %s4 = ssub.s32 1, %s2
  %s5 = scalar_select 0, %s4, %s2
  // Predicated region
  $region2: #{base_model_forward.1} parent=0 // pred_check
    _
  $region3: #{base_model_forward.1} parent=0 // pred_check_branch
    %7 = sbr.rel (0) target = $region5
  $region4: #{base_model_forward.1} parent=0 // pred_region
    _
  $region5: #{base_model_forward.1} parent=0 // pred_fallthru
    _
  %v8 = vld [vmem:[%s0] sm:$0xff]
  %v9 = vld [vmem:[%s0 + $0x8] sm:$0xff]
  %10 = vst [vmem:[%s1] sm:$0xff] %v8
  %11 = vst [vmem:[%s1 + $0x8] sm:$0xff] %v9
  // Predicated region
  $region6: #{base_model_forward.1} parent=0 // pred_check
    _
  $region7: #{base_model_forward.1} parent=0 // pred_check_branch
    %13 = sbr.rel (0) target = $region9
  $region8: #{base_model_forward.1} parent=0 // pred_region
    _
  $region9: #{base_model_forward.1} parent=0 // pred_fallthru
    _
  // Predicated region
  $region10: #{base_model_forward.1} parent=0 // pred_check
    _
  $region11: #{base_model_forward.1} parent=0 // pred_check_branch
    %15 = sbr.rel (0) target = $region13
  $region12: #{base_model_forward.1} parent=0 // pred_region
    _
  $region13: #{base_model_forward.1} parent=0 // pred_fallthru
    _

</llo_original>
